<compile_context>
chip_gen: v5e
topology: v5e:2x2
jax: 0.10.0
libtpu: 0.0.40
codegen_flags: <defaults>
</compile_context>

<pallas_src>
import functools

import jax
import jax.numpy as jnp
from jax.experimental import pallas as pl
from jax.experimental.pallas import tpu as pltpu


# --------------------------------------------------------------------------- #
# Kernels
# --------------------------------------------------------------------------- #
def _ffn_kernel_resident(x_ref, w1t_ref, b1_ref, w2t_ref, b2_ref, o_ref):
    """Both (D, D) weights stay VMEM-resident; one row tile per grid step."""
    x = x_ref[...]
    # h = relu(x @ W1^T + b1); W1 was transposed once in the wrapper, so the
    # MXU sees a plain RHS here (no per-step transpose).
    h = jnp.dot(x, w1t_ref[...], preferred_element_type=jnp.float32)
    h = jnp.maximum(h + b1_ref[...], 0.0)            # bias + ReLU in f32
    h = h.astype(x.dtype)                             # bf16 fast path when used
    y = jnp.dot(h, w2t_ref[...], preferred_element_type=jnp.float32)
    o_ref[...] = (y + b2_ref[...]).astype(o_ref.dtype)


def _ffn_kernel_hidden_tiled(x_ref, w1t_ref, b1_ref, w2t_ref, b2_ref, o_ref,
                             acc_ref):
    """Hidden dim streamed in tile_h chunks; f32 accumulator in VMEM scratch."""
    hh = pl.program_id(1)

    @pl.when(hh == 0)
    def _():
        acc_ref[...] = jnp.zeros_like(acc_ref)

    x = x_ref[...]
    h = jnp.dot(x, w1t_ref[...], preferred_element_type=jnp.float32)
    h = jnp.maximum(h + b1_ref[...], 0.0)             # ReLU per hidden slice: exact
    h = h.astype(x.dtype)
    acc_ref[...] += jnp.dot(h, w2t_ref[...], preferred_element_type=jnp.float32)

    @pl.when(hh == pl.num_programs(1) - 1)
    def _():
        o_ref[...] = (acc_ref[...] + b2_ref[...]).astype(o_ref.dtype)


# --------------------------------------------------------------------------- #
# Planning helpers
# --------------------------------------------------------------------------- #
def _pick_tile_m(m: int) -> int:
    if m < 512:
        return m                       # full extent is always a legal block
    # Keep grid_m >= 2 (2nd TensorCore on v7x + DMA/compute overlap everywhere)
    # and stay 256-aligned for the v6e/v7x MXUs (also 128-aligned for v5e).
    return 256 if m < 2048 else 512


def _pick_tile_h(d: int) -> int:
    # Last dim of the W1^T block => must be a multiple of 128.
    for cand in (512, 256, 128):
        if d % cand == 0:
            return cand
    return 256  # not a divisor of D -> wrapper zero-pads the hidden dim


def _vmem_capacity_bytes() -> int:
    try:
        return int(pltpu.get_tpu_info().vmem_capacity_bytes)
    except Exception:
        return 64 * 1024 * 1024        # conservative fallback: v7x per-TC VMEM


# --------------------------------------------------------------------------- #
# Wrapper
# --------------------------------------------------------------------------- #
@functools.partial(
    jax.jit, static_argnames=("compute_dtype", "force_path", "tile_m", "tile_h"))
def feed_forward_block(x, w1, b1, w2, b2, *, compute_dtype=None,
                       force_path=None, tile_m=None, tile_h=None):
    """layer2(relu(layer1(x))) with PyTorch-layout (out, in) weights.

    x: (batch, seq, dim_ff); w1, w2: (dim_ff, dim_ff); b1, b2: (dim_ff,).
    compute_dtype: optional (e.g. jnp.bfloat16) matmul dtype; f32 accumulation
    and f32 bias/ReLU are kept. force_path in {None, "resident", "tiled"}.
    """
    B, S, D = x.shape
    M = B * S
    out_dtype = x.dtype

    if compute_dtype is not None:       # optional bf16 MXU fast path
        x = x.astype(compute_dtype)
        w1 = w1.astype(compute_dtype)
        w2 = w2.astype(compute_dtype)

    # Pre-transpose once per call (outside the kernel): the kernel then feeds
    # the MXU a plain (in, out) RHS instead of re-paying a DxD transposed load
    # on every grid step.
    w1t = w1.T
    w2t = w2.T
    b1_2d = b1.reshape(1, D).astype(jnp.float32)
    b2_2d = b2.reshape(1, D).astype(jnp.float32)
    x2d = x.reshape(M, D)

    act_bytes = jnp.dtype(x.dtype).itemsize
    w_bytes = jnp.dtype(w1.dtype).itemsize
    out_bytes = jnp.dtype(out_dtype).itemsize

    if tile_m is None:
        tile_m = _pick_tile_m(M)
    tile_m = min(tile_m, M)
    grid_m = pl.cdiv(M, tile_m)

    vmem_cap = _vmem_capacity_bytes() - 8 * 1024 * 1024   # compiler headroom

    # Resident-weight budget: weights/biases single-buffered, x/out tiles
    # double-buffered, plus the live f32 h tile and its cast copy.
    resident_bytes = (
        2 * D * D * w_bytes
        + 2 * D * 4
        + 2 * tile_m * D * act_bytes
        + 2 * tile_m * D * out_bytes
        + tile_m * D * (4 + act_bytes)
    )

    if force_path is not None:
        use_resident = (force_path == "resident")
    else:
        use_resident = resident_bytes <= vmem_cap

    if use_resident:
        cost = pl.CostEstimate(
            flops=4 * M * D * D,
            transcendentals=0,
            bytes_accessed=(M * D * (act_bytes + out_bytes)
                            + 2 * D * D * w_bytes + 2 * D * 4),
        )
        out2d = pl.pallas_call(
            _ffn_kernel_resident,
            out_shape=jax.ShapeDtypeStruct((M, D), out_dtype),
            grid_spec=pltpu.PrefetchScalarGridSpec(
                num_scalar_prefetch=0,
                grid=(grid_m,),
                in_specs=[
                    pl.BlockSpec((tile_m, D), lambda i: (i, 0)),   # x row tile
                    pl.BlockSpec((D, D), lambda i: (0, 0),         # W1^T resident
                                 pipeline_mode=pl.Buffered(1)),
                    pl.BlockSpec((1, D), lambda i: (0, 0),         # b1 resident
                                 pipeline_mode=pl.Buffered(1)),
                    pl.BlockSpec((D, D), lambda i: (0, 0),         # W2^T resident
                                 pipeline_mode=pl.Buffered(1)),
                    pl.BlockSpec((1, D), lambda i: (0, 0),         # b2 resident
                                 pipeline_mode=pl.Buffered(1)),
                ],
                out_specs=pl.BlockSpec((tile_m, D), lambda i: (i, 0)),
            ),
            compiler_params=pltpu.CompilerParams(
                dimension_semantics=("parallel",),
                vmem_limit_bytes=min(
                    vmem_cap, max(2 * resident_bytes, 32 * 1024 * 1024)),
            ),
            cost_estimate=cost,
        )(x2d, w1t, b1_2d, w2t, b2_2d)
        return out2d.reshape(B, S, D)

    # ----------------------- hidden-dim tiled path -------------------------- #
    if tile_h is None:
        tile_h = _pick_tile_h(D)
    grid_h = pl.cdiv(D, tile_h)
    Dh = grid_h * tile_h
    if Dh != D:
        # Zero-pad the hidden dim once in HBM so padded hidden units contribute
        # exactly 0 (relu(x @ 0 + 0) = 0, and its W2^T rows are 0 too).
        pad = Dh - D
        w1t = jnp.pad(w1t, ((0, 0), (0, pad)))
        b1_2d = jnp.pad(b1_2d, ((0, 0), (0, pad)))
        w2t = jnp.pad(w2t, ((0, pad), (0, 0)))

    tiled_bytes = (
        2 * 2 * D * tile_h * w_bytes
        + 2 * tile_h * 4 + D * 4
        + 2 * tile_m * D * act_bytes
        + 2 * tile_m * D * out_bytes
        + tile_m * D * 4
        + tile_m * tile_h * (4 + act_bytes)
    )
    cost = pl.CostEstimate(
        flops=4 * M * D * Dh,
        transcendentals=0,
        bytes_accessed=(M * D * (act_bytes + out_bytes)
                        + grid_m * 2 * D * Dh * w_bytes + 2 * Dh * 4),
    )
    out2d = pl.pallas_call(
        _ffn_kernel_hidden_tiled,
        out_shape=jax.ShapeDtypeStruct((M, D), out_dtype),
        grid_spec=pltpu.PrefetchScalarGridSpec(
            num_scalar_prefetch=0,
            grid=(grid_m, grid_h),                      # reduction axis last
            in_specs=[
                pl.BlockSpec((tile_m, D), lambda i, h: (i, 0)),   # x row tile
                pl.BlockSpec((D, tile_h), lambda i, h: (0, h)),   # W1^T col slab
                pl.BlockSpec((1, tile_h), lambda i, h: (0, h)),   # b1 slab
                pl.BlockSpec((tile_h, D), lambda i, h: (h, 0)),   # W2^T row slab
                pl.BlockSpec((1, D), lambda i, h: (0, 0),         # b2 resident
                             pipeline_mode=pl.Buffered(1)),
            ],
            out_specs=pl.BlockSpec((tile_m, D), lambda i, h: (i, 0)),
            scratch_shapes=[pltpu.VMEM((tile_m, D), jnp.float32)],
        ),
        compiler_params=pltpu.CompilerParams(
            dimension_semantics=("parallel", "arbitrary"),
            vmem_limit_bytes=min(
                vmem_cap, max(2 * tiled_bytes, 32 * 1024 * 1024)),
        ),
        cost_estimate=cost,
    )(x2d, w1t, b1_2d, w2t, b2_2d)
    return out2d.reshape(B, S, D)


# --------------------------------------------------------------------------- #
# Reference + demo
# --------------------------------------------------------------------------- #
def _reference(x, w1, b1, w2, b2):
    p = jax.lax.Precision.HIGHEST
    h = jnp.maximum(jnp.einsum("bsd,od->bso", x, w1, precision=p) + b1, 0.0)
    return jnp.einsum("bsh,oh->bso", h, w2, precision=p) + b2


def _make_inputs(key, batch, seq, dim_ff):
    kx, kw1, kb1, kw2, kb2 = jax.random.split(key, 5)
    bound = 1.0 / (dim_ff ** 0.5)   # PyTorch nn.Linear default init range
    x = jax.random.normal(kx, (batch, seq, dim_ff), dtype=jnp.float32)
    w1 = jax.random.uniform(kw1, (dim_ff, dim_ff), minval=-bound, maxval=bound,
                            dtype=jnp.float32)
    b1 = jax.random.uniform(kb1, (dim_ff,), minval=-bound, maxval=bound,
                            dtype=jnp.float32)
    w2 = jax.random.uniform(kw2, (dim_ff, dim_ff), minval=-bound, maxval=bound,
                            dtype=jnp.float32)
    b2 = jax.random.uniform(kb2, (dim_ff,), minval=-bound, maxval=bound,
                            dtype=jnp.float32)
    return x, w1, b1, w2, b2


if __name__ == "__main__":
    key = jax.random.PRNGKey(0)
    k1, k2, k3 = jax.random.split(key, 3)
    # Tolerance accommodates MXU (bf16-pass) matmul accumulation vs. the
    # HIGHEST-precision reference; genuine bugs would be orders of magnitude off.
    TOL = dict(atol=1e-2, rtol=1e-2)

    # 1) Module-sized case (dim_ff=32): auto-selected resident-weight path.
    x, w1, b1, w2, b2 = _make_inputs(k1, 2, 8, 32)
    out = jax.block_until_ready(feed_forward_block(x, w1, b1, w2, b2))
    ref = _reference(x, w1, b1, w2, b2)
    assert out.shape == (2, 8, 32)
    assert jnp.allclose(out, ref, **TOL), float(jnp.abs(out - ref).max())

    # 2) Hidden-dim tiled path (grid_h = 2) exercised explicitly.
    x, w1, b1, w2, b2 = _make_inputs(k2, 2, 8, 256)
    out = jax.block_until_ready(
        feed_forward_block(x, w1, b1, w2, b2, force_path="tiled", tile_h=128))
    ref = _reference(x, w1, b1, w2, b2)
    assert jnp.allclose(out, ref, **TOL), float(jnp.abs(out - ref).max())

    # 3) Tiled path with hidden-dim zero-padding (D not a multiple of 128).
    x, w1, b1, w2, b2 = _make_inputs(k3, 2, 8, 160)
    out = jax.block_until_ready(
        feed_forward_block(x, w1, b1, w2, b2, force_path="tiled", tile_h=128))
    ref = _reference(x, w1, b1, w2, b2)
    assert jnp.allclose(out, ref, **TOL), float(jnp.abs(out - ref).max())

    print("KERNEL_OK")
</pallas_src>

<mosaic_0001>
module attributes {stable_mosaic.version = 11 : i64} {
  func.func @_ffn_kernel_resident(%arg0: i32, %arg1: memref<16x32xf32, #tpu.memory_space<vmem>>, %arg2: memref<32x32xf32, #tpu.memory_space<vmem>>, %arg3: memref<1x32xf32, #tpu.memory_space<vmem>>, %arg4: memref<32x32xf32, #tpu.memory_space<vmem>>, %arg5: memref<1x32xf32, #tpu.memory_space<vmem>>, %arg6: memref<16x32xf32, #tpu.memory_space<vmem>>) attributes {dimension_semantics = [#tpu.dimension_semantics<parallel>], iteration_bounds = array<i64: 1>, scalar_prefetch = 0 : i64, scratch_operands = 0 : i64, tpu.core_type = #tpu.core_type<tc>, window_params = [{transform_indices = @transform_0, window_bounds = array<i64: 16, 32>}, {pipeline_mode = #tpu.pipeline_mode<synchronous>, transform_indices = @transform_1, window_bounds = array<i64: 32, 32>}, {pipeline_mode = #tpu.pipeline_mode<synchronous>, transform_indices = @transform_2, window_bounds = array<i64: 1, 32>}, {pipeline_mode = #tpu.pipeline_mode<synchronous>, transform_indices = @transform_3, window_bounds = array<i64: 32, 32>}, {pipeline_mode = #tpu.pipeline_mode<synchronous>, transform_indices = @transform_4, window_bounds = array<i64: 1, 32>}, {transform_indices = @transform_5, window_bounds = array<i64: 16, 32>}]} {
    %c0 = arith.constant 0 : index
    %c0_0 = arith.constant 0 : index
    %0 = vector.load %arg1[%c0, %c0_0] : memref<16x32xf32, #tpu.memory_space<vmem>>, vector<16x32xf32>
    %c0_1 = arith.constant 0 : index
    %c0_2 = arith.constant 0 : index
    %1 = vector.load %arg2[%c0_1, %c0_2] : memref<32x32xf32, #tpu.memory_space<vmem>>, vector<32x32xf32>
    %cst = arith.constant dense<0.000000e+00> : vector<16x32xf32>
    %2 = tpu.matmul %0, %1, %cst {dimension_numbers = #tpu.dot_dimension_numbers<[1], [0], [0], [1], [0, 0, 1, 1], [], []>} : vector<16x32xf32>, vector<32x32xf32>, vector<16x32xf32> -> vector<16x32xf32>
    %c0_3 = arith.constant 0 : index
    %c0_4 = arith.constant 0 : index
    %3 = vector.load %arg3[%c0_3, %c0_4] : memref<1x32xf32, #tpu.memory_space<vmem>>, vector<1x32xf32>
    %4 = vector.broadcast %3 : vector<1x32xf32> to vector<16x32xf32>
    %5 = arith.addf %2, %4 : vector<16x32xf32>
    %cst_5 = arith.constant 0.000000e+00 : f32
    %6 = vector.broadcast %cst_5 : f32 to vector<16x32xf32>
    %7 = arith.maximumf %5, %6 : vector<16x32xf32>
    %c0_6 = arith.constant 0 : index
    %c0_7 = arith.constant 0 : index
    %8 = vector.load %arg4[%c0_6, %c0_7] : memref<32x32xf32, #tpu.memory_space<vmem>>, vector<32x32xf32>
    %cst_8 = arith.constant dense<0.000000e+00> : vector<16x32xf32>
    %9 = tpu.matmul %7, %8, %cst_8 {dimension_numbers = #tpu.dot_dimension_numbers<[1], [0], [0], [1], [0, 0, 1, 1], [], []>} : vector<16x32xf32>, vector<32x32xf32>, vector<16x32xf32> -> vector<16x32xf32>
    %c0_9 = arith.constant 0 : index
    %c0_10 = arith.constant 0 : index
    %10 = vector.load %arg5[%c0_9, %c0_10] : memref<1x32xf32, #tpu.memory_space<vmem>>, vector<1x32xf32>
    %11 = vector.broadcast %10 : vector<1x32xf32> to vector<16x32xf32>
    %12 = arith.addf %9, %11 : vector<16x32xf32>
    %c0_11 = arith.constant 0 : index
    %c0_12 = arith.constant 0 : index
    %13 = vector.load %arg6[%c0_11, %c0_12] : memref<16x32xf32, #tpu.memory_space<vmem>>, vector<16x32xf32>
    tpu.vector_store %arg6[%c0_11, %c0_12], %12 {strides = array<i32>} : memref<16x32xf32, #tpu.memory_space<vmem>>, vector<16x32xf32>,
    return
  }
  func.func @transform_0(%arg0: i32) -> (i32, i32) {
    %c0_i32 = arith.constant 0 : i32
    %c0_i32_0 = arith.constant 0 : i32
    return %arg0, %c0_i32 : i32, i32
  }
  func.func @transform_1(%arg0: i32) -> (i32, i32) {
    %c0_i32 = arith.constant 0 : i32
    %c0_i32_0 = arith.constant 0 : i32
    %c0_i32_1 = arith.constant 0 : i32
    return %c0_i32, %c0_i32_0 : i32, i32
  }
  func.func @transform_2(%arg0: i32) -> (i32, i32) {
    %c0_i32 = arith.constant 0 : i32
    %c0_i32_0 = arith.constant 0 : i32
    %c0_i32_1 = arith.constant 0 : i32
    return %c0_i32, %c0_i32_0 : i32, i32
  }
  func.func @transform_3(%arg0: i32) -> (i32, i32) {
    %c0_i32 = arith.constant 0 : i32
    %c0_i32_0 = arith.constant 0 : i32
    %c0_i32_1 = arith.constant 0 : i32
    return %c0_i32, %c0_i32_0 : i32, i32
  }
  func.func @transform_4(%arg0: i32) -> (i32, i32) {
    %c0_i32 = arith.constant 0 : i32
    %c0_i32_0 = arith.constant 0 : i32
    %c0_i32_1 = arith.constant 0 : i32
    return %c0_i32, %c0_i32_0 : i32, i32
  }
  func.func @transform_5(%arg0: i32) -> (i32, i32) {
    %c0_i32 = arith.constant 0 : i32
    %c0_i32_0 = arith.constant 0 : i32
    return %arg0, %c0_i32 : i32, i32
  }
}

</mosaic_0001>

<llo_original>
// kernel: feed_forward_block.1
$region0: #{feed_forward_block.1}
  #allocation0 [shape = 'u32[]', space=smem, size = 0x4, offset = 0x4, fixed_abs, tag = 'smem constant byte address 0x4 - core index']
  #allocation1 [shape = 'u32[72,128]{1,0:T(1,128)}', space=vmem, size = 0x9000, scoped, tag = 'internal scratch']
  %s0 = inlined_call_operand.vmem [shape: f32[16,32], index: 0, kind: input, shape index: {}]
  %s1 = inlined_call_operand.vmem [shape: f32[32,32], index: 1, kind: input, shape index: {}]
  %s2 = inlined_call_operand.vmem [shape: f32[1,32], index: 2, kind: input, shape index: {}]
  %s3 = inlined_call_operand.vmem [shape: f32[32,32], index: 3, kind: input, shape index: {}]
  %s4 = inlined_call_operand.vmem [shape: f32[1,32], index: 4, kind: input, shape index: {}]
  %s5 = inlined_call_operand.hbm [shape: f32[16,32], index: 5, kind: output, shape index: {}]
  %s6 = sld [smem:[#allocation0]]
  $region30: #{feed_forward_block.1} parent=0
    _
  %s8 = ssub.s32 1, %s6
  %s9 = scalar_select 0, %s8, %s6
  $region1: #{feed_forward_block.1} parent=0
    #allocation2 [shape = 'u8[8192]{0}', space=vmem, size = 0x2000, scoped, tag = 'output window, operand 0, single buffered']
    #allocation3 [shape = 's32[1]{0}', space=sflag, size = 0x4, scoped, tag = 'scoped memory for feed_forward_block.1']
    %10 = vsyncpa [#allocation3], 0
    // Predicated region
    $region2: #{feed_forward_block.1} parent=1 // pred_check
      _
    $region3: #{feed_forward_block.1} parent=1 // pred_check_branch
      %12 = sbr.rel (0) target = $region5
    $region4: #{feed_forward_block.1} parent=1 // pred_region
      _
    $region5: #{feed_forward_block.1} parent=1 // pred_fallthru
      _
    // Predicated region
    $region6: #{feed_forward_block.1} parent=1 // pred_check
      _
    $region7: #{feed_forward_block.1} parent=1 // pred_check_branch
      %14 = sbr.rel (0) target = $region9
    $region8: #{feed_forward_block.1} parent=1 // pred_region
      _
    $region9: #{feed_forward_block.1} parent=1 // pred_fallthru
      _
    // Predicated region
    $region10: #{feed_forward_block.1} parent=1 // pred_check
      _
    $region11: #{feed_forward_block.1} parent=1 // pred_check_branch
      %16 = sbr.rel (0) target = $region13
    $region12: #{feed_forward_block.1} parent=1 // pred_region
      _
    $region13: #{feed_forward_block.1} parent=1 // pred_fallthru
      _
    // Predicated region
    $region14: #{feed_forward_block.1} parent=1 // pred_check
      _
    $region15: #{feed_forward_block.1} parent=1 // pred_check_branch
      %18 = sbr.rel (0) target = $region17
    $region16: #{feed_forward_block.1} parent=1 // pred_region
      _
    $region17: #{feed_forward_block.1} parent=1 // pred_fallthru
      _
    // Predicated region
    $region18: #{feed_forward_block.1} parent=1 // pred_check
      _
    $region19: #{feed_forward_block.1} parent=1 // pred_check_branch
      %20 = sbr.rel (0) target = $region21
    $region20: #{feed_forward_block.1} parent=1 // pred_region
      _
    $region21: #{feed_forward_block.1} parent=1 // pred_fallthru
      _
    %v21 = vld [vmem:[%s0] sm:$0xff]
    %v22 = vld [vmem:[%s0 + $0x8] sm:$0xff]
    %v23 = vld [vmem:[%s1] sm:$0xff]
    %v24 = vld [vmem:[%s1 + $0x8] sm:$0xff]
    %v25 = vld [vmem:[%s1 + $0x10] sm:$0xff]
    %v26 = vld [vmem:[%s1 + $0x18] sm:$0xff]
    %v27 = vld [vmem:[%s2] sm:$0x1]
    %v29 = vperm.slane %v27, 0
    %vm31 = vcmask 261120
    %v33 = vsel %vm31, %v21, 0
    %v36 = vsel %vm31, %v22, 0
    %38 = vmatpush.msra.mxu0 0.0
    %39 = vmatpush.msra.mxu0 0.0
    %40 = vmatpush.msra.mxu0 0.0
    %41 = vmatpush.msra.mxu0 0.0
    %42 = vmatpush.msra.mxu0 0.0
    %43 = vmatpush.msra.mxu0 0.0
    %44 = vmatpush.msra.mxu0 0.0
    %45 = vmatpush.msra.mxu0 0.0
    %46 = vmatpush.msra.mxu0 0.0
    %47 = vmatpush.msra.mxu0 0.0
    %48 = vmatpush.msra.mxu0 0.0
    %49 = vmatpush.msra.mxu0 0.0
    %50 = vmatpush.msra.mxu0 %v26
    %51 = vmatpush.msra.mxu0 %v25
    %52 = vmatpush.msra.mxu0 %v24
    %53 = vmatpush.msra.mxu0 %v23
    %54 = vmatmul.f32.gmra.mxu0 %v33
    %v55 = vpop.f32.mrf.mxu0
    %v56 = vadd.f32 %v29, %v55
    %57 = vmatmul.f32.gmra.mxu0 %v36
    %v58 = vpop.f32.mrf.mxu0
    %v59 = vadd.f32 %v29, %v58
    %60 = vdwg.mxu0
    %v61 = vmax.f32 %v56, 0.0
    %v62 = vmax.f32 %v59, 0.0
    %v63 = vld [vmem:[%s3] sm:$0xff]
    %v64 = vld [vmem:[%s3 + $0x8] sm:$0xff]
    %v65 = vld [vmem:[%s3 + $0x10] sm:$0xff]
    %v66 = vld [vmem:[%s3 + $0x18] sm:$0xff]
    %v67 = vld [vmem:[%s4] sm:$0x1]
    %v69 = vperm.slane %v67, 0
    %v72 = vsel %vm31, %v61, 0
    %v75 = vsel %vm31, %v62, 0
    %77 = vmatpush.msra.mxu0 0.0
    %78 = vmatpush.msra.mxu0 0.0
    %79 = vmatpush.msra.mxu0 0.0
    %80 = vmatpush.msra.mxu0 0.0
    %81 = vmatpush.msra.mxu0 0.0
    %82 = vmatpush.msra.mxu0 0.0
    %83 = vmatpush.msra.mxu0 0.0
    %84 = vmatpush.msra.mxu0 0.0
    %85 = vmatpush.msra.mxu0 0.0
    %86 = vmatpush.msra.mxu0 0.0
    %87 = vmatpush.msra.mxu0 0.0
    %88 = vmatpush.msra.mxu0 0.0
    %89 = vmatpush.msra.mxu0 %v66
    %90 = vmatpush.msra.mxu0 %v65
    %91 = vmatpush.msra.mxu0 %v64
    %92 = vmatpush.msra.mxu0 %v63
    %93 = vmatmul.f32.gmra.mxu0 %v72
    %v94 = vpop.f32.mrf.mxu0
    %v95 = vadd.f32 %v69, %v94
    %96 = vmatmul.f32.gmra.mxu0 %v75
    %v97 = vpop.f32.mrf.mxu0
    %v98 = vadd.f32 %v69, %v97
    %99 = vdwg.mxu0
    %100 = vst.msk [vmem:[#allocation2] sm:$0xff] %vm31, %v95
    %101 = vst.msk [vmem:[#allocation2 + $0x8] sm:$0xff] %vm31, %v98
    // Predicated region
    $region22: #{feed_forward_block.1} parent=1 // pred_check
      _
    $region23: #{feed_forward_block.1} parent=1 // pred_check_branch
      %103 = sbr.rel (0) target = $region25
    $region24: #{feed_forward_block.1} parent=1 // pred_region
      %105 = vsyncadd [#allocation3], 0
      %s106 = sshll.u32 [#allocation2], 4
      %s107 = int_to_ptr.vmem [resolvable:$true] %s106
      %s108 = sshll.u32 %s5, 4
      %s109 = int_to_ptr.hbm [resolvable:$true] %s108
      %114 = dma.vmem_to_hbm [thread:$0]  %s107, 256, %s109, [#allocation3], 128, 128, 8
    $region25: #{feed_forward_block.1} parent=1 // pred_fallthru
      _
    // Predicated region
    $region26: #{feed_forward_block.1} parent=1 // pred_check
      _
    $region27: #{feed_forward_block.1} parent=1 // pred_check_branch
      %116 = sbr.rel (0) target = $region29
    $region28: #{feed_forward_block.1} parent=1 // pred_region
      %118 = dma.done [#allocation3], 256
    $region29: #{feed_forward_block.1} parent=1 // pred_fallthru
      _
    %119 = vsyncpa [#allocation3], 1

</llo_original>
